<compile_context>
chip_gen: v6e
topology: v6e:2x2x1
jax: 0.10.0
libtpu: 0.0.40
codegen_flags: <defaults>
</compile_context>

<pallas_src>
import functools

import jax
import jax.numpy as jnp
from jax import lax
from jax.experimental import pallas as pl
from jax.experimental.pallas import tpu as pltpu


def _round_up(v, m):
    return (v + m - 1) // m * m


def _cdiv(a, b):
    return -(-a // b)


def _vmem_capacity_bytes():
    try:
        return int(pltpu.get_tpu_info().vmem_capacity_bytes)
    except Exception:
        return 64 << 20  # conservative fallback: v7x per-TensorCore VMEM


def _zsc_kernel(x_ref, wlin_ref, blin_ref, zsw_ref, o_ref, y_ref, *,
                norm_temperature: float, use_bias: bool, cls_bias: float,
                tile_c: int, num_out: int, c1_p: int):
    j = pl.program_id(1)  # class-tile index (innermost, "arbitrary")

    # First matmul + row normalization run once per batch tile; the
    # normalized / temperature-scaled y is cached (bf16) for all class tiles.
    @pl.when(j == 0)
    def _():
        xb = x_ref[...].astype(wlin_ref.dtype)             # in-kernel bf16 cast
        y = jnp.dot(xb, wlin_ref[...], preferred_element_type=jnp.float32)
        y = y + blin_ref[...]                              # (1, zs_dim_p) f32
        # F.normalize(y, p=2, dim=1) * temperature as one per-row scale:
        #   1 / max(||row||_2, 1e-12) == rsqrt(max(||row||^2, 1e-24))
        sq = jnp.sum(y * y, axis=-1, keepdims=True)
        scale = lax.rsqrt(jnp.maximum(sq, 1e-24)) * jnp.float32(norm_temperature)
        y_ref[...] = (y * scale).astype(y_ref.dtype)

    # scores = y @ zs_weight tile (bf16 operands, f32 MXU accumulation).
    out = jnp.dot(y_ref[...], zsw_ref[...], preferred_element_type=jnp.float32)
    if use_bias:
        bias = jnp.float32(cls_bias)
        if num_out < c1_p:
            # Keep lane-padded class columns at exactly 0 so the padded
            # output can be consumed directly (softmax/argmax over :num_out).
            col = lax.broadcasted_iota(jnp.int32, out.shape, 1) + j * tile_c
            out = out + jnp.where(col < num_out, bias, jnp.float32(0.0))
        else:
            out = out + bias
    o_ref[...] = out.astype(o_ref.dtype)


def prepare_zero_shot_classifier_params(w_lin, b_lin, zs_weight,
                                        compute_dtype=jnp.bfloat16):
    """One-time parameter preparation (call once, NOT per forward).

    w_lin:     (zs_dim, D_in)  nn.Linear weight layout
    b_lin:     (zs_dim,)
    zs_weight: (zs_dim, C+1)   (already L2-normalized along dim 0 if
                                norm_weight=True; zero background column
                                appended, as in the PyTorch module).
    The dynamic `classifier is not None` path is supported by passing the
    (normalized, transposed) classifier here as zs_weight.
    Returns (w_lin_t_padded, b_lin_2d, zs_weight_padded, num_out).
    """
    zs_dim, _ = w_lin.shape
    c1 = zs_weight.shape[1]
    zs_dim_p = _round_up(zs_dim, 128)
    c1_p = _round_up(c1, 128)          # lane-dense output / zs_weight columns

    w_lin_t = jnp.transpose(w_lin)                         # (D_in, zs_dim)
    w_lin_t = jnp.pad(w_lin_t, ((0, 0), (0, zs_dim_p - zs_dim)))
    w_lin_t = w_lin_t.astype(compute_dtype)
    # TODO(synk): for ragged D_in, have the upstream feature producer emit a
    # 128-aligned feature dim (and pad W^T rows here) so both matmuls run
    # full-width K; x arrives per-call in its native layout, so we keep K as-is.

    b_lin_2d = jnp.pad(b_lin, (0, zs_dim_p - zs_dim)).reshape(1, zs_dim_p)
    b_lin_2d = b_lin_2d.astype(jnp.float32)

    zs_weight_p = jnp.pad(zs_weight,
                          ((0, zs_dim_p - zs_dim), (0, c1_p - c1)))
    zs_weight_p = zs_weight_p.astype(compute_dtype)
    return w_lin_t, b_lin_2d, zs_weight_p, c1


def zero_shot_classifier_forward(x, w_lin_t, b_lin_2d, zs_weight_p, num_out, *,
                                 norm_temperature=50.0,
                                 use_bias=False, cls_bias=0.0,
                                 tile_b=None, tile_c=None,
                                 out_dtype=jnp.float32,
                                 trim_output=True):
    """x: (B, D_in) f32 RoI features; remaining args from
    prepare_zero_shot_classifier_params.  `use_bias` corresponds to PyTorch's
    `use_bias_cfg < 0` and `cls_bias` to the learned scalar.
    Returns (B, num_out) scores (or the lane-padded (B, c1_p) buffer, padded
    columns exactly 0, when trim_output=False).

    # TODO(synk): use_regional_embedding=True would additionally return the
    # L2-normalized features (pre-temperature); default config (False) omits it.
    """
    B, D_in = x.shape
    zs_dim_p = w_lin_t.shape[1]
    c1_p = zs_weight_p.shape[1]
    compute_dtype = w_lin_t.dtype
    w_itemsize = jnp.dtype(compute_dtype).itemsize
    out_itemsize = jnp.dtype(out_dtype).itemsize

    # ---- batch tile: fill the 256x256 MXU on v6e/v7x for big batches, never
    # larger than needed, and guarantee >=2 grid steps (v7x megacore) when the
    # batch is large enough to be worth splitting.
    if tile_b is None:
        tile_b = 256 if B >= 256 else 128
    tile_b = min(tile_b, _round_up(B, 8))
    tile_b = max(8, _round_up(tile_b, 8))
    if B > 32 and _cdiv(B, tile_b) < 2:
        tile_b = max(8, _round_up(_cdiv(B, 2), 8))

    # ---- class tile: lane-dense multiple of 128; whole (padded) vocab if small.
    if tile_c is None:
        tile_c = min(c1_p, 2048)
    tile_c = max(128, _round_up(min(tile_c, c1_p), 128))

    # ---- VMEM budget: weights single-buffered, per-step tiles double-buffered.
    # Shrink the class tile until the estimate fits under capacity - headroom.
    cap = max(_vmem_capacity_bytes() - (8 << 20), 16 << 20)
    base_bytes = (D_in * zs_dim_p * w_itemsize        # W^T, Buffered(1)
                  + zs_dim_p * 4                      # Linear bias, Buffered(1)
                  + 2 * tile_b * D_in * 4             # f32 x tile, 2-buffered
                  + tile_b * zs_dim_p * w_itemsize    # cached-y VMEM scratch
                  + (2 << 20))                        # Mosaic internal headroom

    def _need(tc):
        zsw_bufs = 1 if tc >= c1_p else 2
        return (base_bytes
                + zsw_bufs * zs_dim_p * tc * w_itemsize
                + 2 * tile_b * tc * out_itemsize)

    while _need(tile_c) > cap and tile_c > 128:
        tile_c = max(128, _round_up(tile_c // 2, 128))
    vmem_limit = int(min(max(_need(tile_c), 16 << 20), cap))

    n_b = _cdiv(B, tile_b)
    n_c = _cdiv(c1_p, tile_c)

    # zs_weight: resident (single-buffered) when one class tile, otherwise
    # streamed along the class axis with the default double buffering.
    if n_c == 1:
        zsw_spec = pl.BlockSpec((zs_dim_p, tile_c), lambda i, j: (0, j),
                                pipeline_mode=pl.Buffered(1))
    else:
        zsw_spec = pl.BlockSpec((zs_dim_p, tile_c), lambda i, j: (0, j))

    kernel = functools.partial(
        _zsc_kernel,
        norm_temperature=float(norm_temperature),
        use_bias=bool(use_bias),
        cls_bias=float(cls_bias),
        tile_c=int(tile_c),
        num_out=int(num_out),
        c1_p=int(c1_p),
    )

    out = pl.pallas_call(
        kernel,
        out_shape=jax.ShapeDtypeStruct((B, c1_p), out_dtype),
        grid_spec=pltpu.PrefetchScalarGridSpec(
            num_scalar_prefetch=0,
            grid=(n_b, n_c),
            in_specs=[
                # x tile: f32, constant over the class axis.
                pl.BlockSpec((tile_b, D_in), lambda i, j: (i, 0)),
                # Resident parameters: constant block index -> single buffer.
                pl.BlockSpec((D_in, zs_dim_p), lambda i, j: (0, 0),
                             pipeline_mode=pl.Buffered(1)),
                pl.BlockSpec((1, zs_dim_p), lambda i, j: (0, 0),
                             pipeline_mode=pl.Buffered(1)),
                zsw_spec,
            ],
            out_specs=pl.BlockSpec((tile_b, tile_c), lambda i, j: (i, j)),
            scratch_shapes=[pltpu.VMEM((tile_b, zs_dim_p), compute_dtype)],
        ),
        compiler_params=pltpu.CompilerParams(
            dimension_semantics=("parallel", "arbitrary"),
            vmem_limit_bytes=vmem_limit),
    )(x, w_lin_t, b_lin_2d, zs_weight_p)

    if trim_output:
        return out[:, :num_out]
    return out  # lane-padded (B, c1_p); padded class columns are exactly 0


def _reference(x, w_lin, b_lin, zs_weight, norm_temperature, compute_dtype):
    """Pure-JAX reference mirroring the kernel's bf16 operand quantization."""
    f32 = jnp.float32
    xq = x.astype(compute_dtype).astype(f32)
    wq = w_lin.astype(compute_dtype).astype(f32)
    y = xq @ wq.T + b_lin.astype(f32)
    n = jnp.maximum(jnp.linalg.norm(y, axis=1, keepdims=True), 1e-12)
    y = y / n * norm_temperature
    yq = y.astype(compute_dtype).astype(f32)
    zq = zs_weight.astype(compute_dtype).astype(f32)
    return yq @ zq


if __name__ == "__main__":
    # Small deterministic config (module defaults: zs_weight_path='rand',
    # norm_weight=True, norm_temperature=50.0, use_bias=0.0 -> no bias).
    B = 8            # number of RoI features
    D_in = 32        # input_size (channels * width * height)
    ZS_DIM = 128     # zs_weight_dim
    NUM_CLASSES = 15 # -> zs_weight has NUM_CLASSES + 1 = 16 columns

    key = jax.random.PRNGKey(0)
    k_x, k_w, k_b, k_zs = jax.random.split(key, 4)

    x = jax.random.normal(k_x, (B, D_in), dtype=jnp.float32)

    # nn.Linear(input_size, zs_weight_dim): weight (zs_dim, D_in), bias (zs_dim,)
    w_lin = jax.random.normal(k_w, (ZS_DIM, D_in), dtype=jnp.float32) * 0.02
    b_lin = jax.random.normal(k_b, (ZS_DIM,), dtype=jnp.float32) * 0.02

    # zs_weight_path == 'rand': normal std=0.01, append zero background column,
    # then L2-normalize along dim 0 (norm_weight=True).
    zs_weight = jax.random.normal(
        k_zs, (ZS_DIM, NUM_CLASSES), dtype=jnp.float32) * 0.01
    zs_weight = jnp.concatenate(
        [zs_weight, jnp.zeros((ZS_DIM, 1), dtype=jnp.float32)], axis=1)
    col_norm = jnp.maximum(
        jnp.linalg.norm(zs_weight, axis=0, keepdims=True), 1e-12)
    zs_weight = zs_weight / col_norm

    # One-time parameter prep (transpose / pad / bf16 cast) outside the forward.
    w_lin_t, b_lin_2d, zs_weight_p, num_out = prepare_zero_shot_classifier_params(
        w_lin, b_lin, zs_weight, compute_dtype=jnp.bfloat16)

    out = zero_shot_classifier_forward(
        x, w_lin_t, b_lin_2d, zs_weight_p, num_out,
        norm_temperature=50.0, use_bias=False, cls_bias=0.0)
    out = jax.block_until_ready(out)

    ref = _reference(x, w_lin, b_lin, zs_weight, 50.0, jnp.bfloat16)
    assert out.shape == (B, NUM_CLASSES + 1), out.shape
    assert jnp.allclose(out, ref, atol=2e-2, rtol=2e-2), \
        float(jnp.max(jnp.abs(out - ref)))

    print("KERNEL_OK")
</pallas_src>

<mosaic_0001>
module attributes {stable_mosaic.version = 11 : i64} {
  func.func @_zsc_kernel(%arg0: i32, %arg1: i32, %arg2: memref<8x32xf32, #tpu.memory_space<vmem>>, %arg3: memref<32x128xbf16, #tpu.memory_space<vmem>>, %arg4: memref<1x128xf32, #tpu.memory_space<vmem>>, %arg5: memref<128x128xbf16, #tpu.memory_space<vmem>>, %arg6: memref<8x128xf32, #tpu.memory_space<vmem>>, %arg7: memref<8x128xbf16, #tpu.memory_space<vmem>>) attributes {dimension_semantics = [#tpu.dimension_semantics<parallel>, #tpu.dimension_semantics<arbitrary>], iteration_bounds = array<i64: 1, 1>, scalar_prefetch = 0 : i64, scratch_operands = 1 : i64, tpu.core_type = #tpu.core_type<tc>, window_params = [{transform_indices = @transform_0, window_bounds = array<i64: 8, 32>}, {pipeline_mode = #tpu.pipeline_mode<synchronous>, transform_indices = @transform_1, window_bounds = array<i64: 32, 128>}, {pipeline_mode = #tpu.pipeline_mode<synchronous>, transform_indices = @transform_2, window_bounds = array<i64: 1, 128>}, {pipeline_mode = #tpu.pipeline_mode<synchronous>, transform_indices = @transform_3, window_bounds = array<i64: 128, 128>}, {transform_indices = @transform_4, window_bounds = array<i64: 8, 128>}]} {
    %c0_i32 = arith.constant 0 : i32
    %0 = arith.cmpi eq, %arg1, %c0_i32 : i32
    %1 = arith.extui %0 : i1 to i32
    %c0_i32_0 = arith.constant 0 : i32
    %2 = arith.cmpi ne, %1, %c0_i32_0 : i32
    scf.if %2 {
      %c0_6 = arith.constant 0 : index
      %c0_7 = arith.constant 0 : index
      %7 = vector.load %arg2[%c0_6, %c0_7] : memref<8x32xf32, #tpu.memory_space<vmem>>, vector<8x32xf32>
      %8 = arith.truncf %7 : vector<8x32xf32> to vector<8x32xbf16>
      %c0_8 = arith.constant 0 : index
      %c0_9 = arith.constant 0 : index
      %9 = vector.load %arg3[%c0_8, %c0_9] : memref<32x128xbf16, #tpu.memory_space<vmem>>, vector<32x128xbf16>
      %cst_10 = arith.constant dense<0.000000e+00> : vector<8x128xf32>
      %10 = tpu.matmul %8, %9, %cst_10 {dimension_numbers = #tpu.dot_dimension_numbers<[1], [0], [0], [1], [0, 0, 1, 1], [], []>} : vector<8x32xbf16>, vector<32x128xbf16>, vector<8x128xf32> -> vector<8x128xf32>
      %c0_11 = arith.constant 0 : index
      %c0_12 = arith.constant 0 : index
      %11 = vector.load %arg4[%c0_11, %c0_12] : memref<1x128xf32, #tpu.memory_space<vmem>>, vector<1x128xf32>
      %12 = vector.broadcast %11 : vector<1x128xf32> to vector<8x128xf32>
      %13 = arith.addf %10, %12 : vector<8x128xf32>
      %14 = arith.mulf %13, %13 : vector<8x128xf32>
      %cst_13 = arith.constant dense<0.000000e+00> : vector<8xf32>
      %15 = vector.multi_reduction <add>, %14, %cst_13 [1] : vector<8x128xf32> to vector<8xf32>
      %16 = vector.shape_cast %15 : vector<8xf32> to vector<8x1xf32>
      %cst_14 = arith.constant 1.000000e-24 : f32
      %17 = vector.broadcast %cst_14 : f32 to vector<8x1xf32>
      %18 = arith.maximumf %16, %17 : vector<8x1xf32>
      %19 = math.rsqrt %18 : vector<8x1xf32>
      %cst_15 = arith.constant 5.000000e+01 : f32
      %20 = vector.broadcast %cst_15 : f32 to vector<8x1xf32>
      %21 = arith.mulf %19, %20 : vector<8x1xf32>
      %22 = vector.broadcast %21 : vector<8x1xf32> to vector<8x128xf32>
      %23 = arith.mulf %13, %22 : vector<8x128xf32>
      %24 = arith.truncf %23 : vector<8x128xf32> to vector<8x128xbf16>
      %c0_16 = arith.constant 0 : index
      %c0_17 = arith.constant 0 : index
      %25 = vector.load %arg7[%c0_16, %c0_17] : memref<8x128xbf16, #tpu.memory_space<vmem>>, vector<8x128xbf16>
      tpu.vector_store %arg7[%c0_16, %c0_17], %24 {strides = array<i32>} : memref<8x128xbf16, #tpu.memory_space<vmem>>, vector<8x128xbf16>,
    } else {
    }
    %c0 = arith.constant 0 : index
    %c0_1 = arith.constant 0 : index
    %3 = vector.load %arg7[%c0, %c0_1] : memref<8x128xbf16, #tpu.memory_space<vmem>>, vector<8x128xbf16>
    %c0_2 = arith.constant 0 : index
    %c0_3 = arith.constant 0 : index
    %4 = vector.load %arg5[%c0_2, %c0_3] : memref<128x128xbf16, #tpu.memory_space<vmem>>, vector<128x128xbf16>
    %cst = arith.constant dense<0.000000e+00> : vector<8x128xf32>
    %5 = tpu.matmul %3, %4, %cst {dimension_numbers = #tpu.dot_dimension_numbers<[1], [0], [0], [1], [0, 0, 1, 1], [], []>} : vector<8x128xbf16>, vector<128x128xbf16>, vector<8x128xf32> -> vector<8x128xf32>
    %c0_4 = arith.constant 0 : index
    %c0_5 = arith.constant 0 : index
    %6 = vector.load %arg6[%c0_4, %c0_5] : memref<8x128xf32, #tpu.memory_space<vmem>>, vector<8x128xf32>
    tpu.vector_store %arg6[%c0_4, %c0_5], %5 {strides = array<i32>} : memref<8x128xf32, #tpu.memory_space<vmem>>, vector<8x128xf32>,
    return
  }
  func.func @transform_0(%arg0: i32, %arg1: i32) -> (i32, i32) {
    %c0_i32 = arith.constant 0 : i32
    %c0_i32_0 = arith.constant 0 : i32
    return %arg0, %c0_i32 : i32, i32
  }
  func.func @transform_1(%arg0: i32, %arg1: i32) -> (i32, i32) {
    %c0_i32 = arith.constant 0 : i32
    %c0_i32_0 = arith.constant 0 : i32
    %c0_i32_1 = arith.constant 0 : i32
    return %c0_i32, %c0_i32_0 : i32, i32
  }
  func.func @transform_2(%arg0: i32, %arg1: i32) -> (i32, i32) {
    %c0_i32 = arith.constant 0 : i32
    %c0_i32_0 = arith.constant 0 : i32
    %c0_i32_1 = arith.constant 0 : i32
    return %c0_i32, %c0_i32_0 : i32, i32
  }
  func.func @transform_3(%arg0: i32, %arg1: i32) -> (i32, i32) {
    %c0_i32 = arith.constant 0 : i32
    %c0_i32_0 = arith.constant 0 : i32
    return %c0_i32, %arg1 : i32, i32
  }
  func.func @transform_4(%arg0: i32, %arg1: i32) -> (i32, i32) {
    %c0_i32 = arith.constant 0 : i32
    return %arg0, %arg1 : i32, i32
  }
}

</mosaic_0001>

<llo_original>
// kernel: tpu_custom_call.1
$region0: #{tpu_custom_call.1}
  #allocation0 [shape = 'u32[]', space=smem, size = 0x4, offset = 0x4, fixed_abs, tag = 'smem constant byte address 0x4 - core index']
  #allocation1 [shape = 'u32[144,128]{1,0:T(1,128)}', space=vmem, size = 0x12000, scoped, tag = 'internal scratch']
  #allocation2 [shape = 'bf16[8,128]{1,0:T(8,128)(2,1)}', space=vmem, size = 0x800, scoped, tag = 'scratch operand']
  %s0 = inlined_call_operand.hbm [shape: f32[8,32], index: 0, kind: input, shape index: {}]
  %s1 = inlined_call_operand.hbm [shape: bf16[32,128], index: 1, kind: input, shape index: {}]
  %s2 = inlined_call_operand.vmem [shape: f32[1,128], index: 2, kind: input, shape index: {}]
  %s3 = inlined_call_operand.hbm [shape: bf16[128,128], index: 3, kind: input, shape index: {}]
  %s4 = inlined_call_operand.hbm [shape: f32[8,128], index: 4, kind: output, shape index: {}]
  %s5 = sld [smem:[#allocation0]]
  $region42: #{tpu_custom_call.1} parent=0
    _
  %s7 = ssub.s32 1, %s5
  %s8 = scalar_select 0, %s7, %s5
  $region1: #{tpu_custom_call.1} parent=0
    #allocation3 [shape = 'u8[4096]{0}', space=vmem, size = 0x1000, scoped, tag = 'input window, operand 0, single buffered']
    #allocation4 [shape = 's32[1]{0}', space=sflag, size = 0x4, scoped, tag = 'scoped memory for tpu_custom_call.1']
    #allocation5 [shape = 's32[1]{0}', space=sflag, size = 0x4, scoped, tag = 'scoped memory for tpu_custom_call.1']
    #allocation6 [shape = 'u8[8192]{0}', space=vmem, size = 0x2000, scoped, tag = 'input window, operand 1, single buffered']
    #allocation7 [shape = 's32[1]{0}', space=sflag, size = 0x4, scoped, tag = 'scoped memory for tpu_custom_call.1']
    #allocation8 [shape = 'u8[32768]{0}', space=vmem, size = 0x8000, scoped, tag = 'input window, operand 3, single buffered']
    #allocation9 [shape = 'u8[4096]{0}', space=vmem, size = 0x1000, scoped, tag = 'output window, operand 0, single buffered']
    %9 = vsyncpa [#allocation4], 0
    %10 = vsyncpa [#allocation7], 0
    %11 = vsyncpa [#allocation5], 0
    // Predicated region
    $region2: #{tpu_custom_call.1} parent=1 // pred_check
      _
    $region3: #{tpu_custom_call.1} parent=1 // pred_check_branch
      %13 = sbr.rel (0) target = $region5
    $region4: #{tpu_custom_call.1} parent=1 // pred_region
      %s15 = ssub.s32 128, 128
      %16 = vsyncadd [#allocation4], %s15
      %s18 = sshll.u32 [#allocation3], 4
      %s19 = int_to_ptr.vmem [resolvable:$true] %s18
      %21 = dma.hbm_to_vmem [thread:$0]  %s0, 128, %s19, [#allocation4]
    $region5: #{tpu_custom_call.1} parent=1 // pred_fallthru
      _
    // Predicated region
    $region6: #{tpu_custom_call.1} parent=1 // pred_check
      _
    $region7: #{tpu_custom_call.1} parent=1 // pred_check_branch
      %23 = sbr.rel (0) target = $region9
    $region8: #{tpu_custom_call.1} parent=1 // pred_region
      %s25 = ssub.s32 256, 256
      %26 = vsyncadd [#allocation7], %s25
      %s27 = sshll.u32 [#allocation6], 4
      %s28 = int_to_ptr.vmem [resolvable:$true] %s27
      %33 = dma.hbm_to_vmem [thread:$0]  %s1, 256, %s28, [#allocation7], 64, 64, 4
    $region9: #{tpu_custom_call.1} parent=1 // pred_fallthru
      _
    // Predicated region
    $region10: #{tpu_custom_call.1} parent=1 // pred_check
      _
    $region11: #{tpu_custom_call.1} parent=1 // pred_check_branch
      %35 = sbr.rel (0) target = $region13
    $region12: #{tpu_custom_call.1} parent=1 // pred_region
      _
    $region13: #{tpu_custom_call.1} parent=1 // pred_fallthru
      _
    // Predicated region
    $region14: #{tpu_custom_call.1} parent=1 // pred_check
      _
    $region15: #{tpu_custom_call.1} parent=1 // pred_check_branch
      %37 = sbr.rel (0) target = $region17
    $region16: #{tpu_custom_call.1} parent=1 // pred_region
      %s39 = ssub.s32 1024, 1024
      %40 = vsyncadd [#allocation7], %s39
      %s41 = sshll.u32 [#allocation8], 4
      %s42 = int_to_ptr.vmem [resolvable:$true] %s41
      %47 = dma.hbm_to_vmem [thread:$0]  %s3, 1024, %s42, [#allocation7], 64, 64, 4
    $region17: #{tpu_custom_call.1} parent=1 // pred_fallthru
      _
    // Predicated region
    $region18: #{tpu_custom_call.1} parent=1 // pred_check
      _
    $region19: #{tpu_custom_call.1} parent=1 // pred_check_branch
      %49 = sbr.rel (0) target = $region21
    $region20: #{tpu_custom_call.1} parent=1 // pred_region
      %50 = dma.done [#allocation4], 128
    $region21: #{tpu_custom_call.1} parent=1 // pred_fallthru
      _
    // Predicated region
    $region22: #{tpu_custom_call.1} parent=1 // pred_check
      _
    $region23: #{tpu_custom_call.1} parent=1 // pred_check_branch
      %52 = sbr.rel (0) target = $region25
    $region24: #{tpu_custom_call.1} parent=1 // pred_region
      %53 = dma.done [#allocation7], 256
    $region25: #{tpu_custom_call.1} parent=1 // pred_fallthru
      _
    // Predicated region
    $region26: #{tpu_custom_call.1} parent=1 // pred_check
      _
    $region27: #{tpu_custom_call.1} parent=1 // pred_check_branch
      %55 = sbr.rel (0) target = $region29
    $region28: #{tpu_custom_call.1} parent=1 // pred_region
      %56 = dma.done [#allocation7], 1024
    $region29: #{tpu_custom_call.1} parent=1 // pred_fallthru
      _
    %p58 = scmp.eq.s32.totalorder 0, 0
    // Predicated region
    $region30: #{tpu_custom_call.1} parent=1 // pred_check
      %p59 = pneg %p58
    $region31: #{tpu_custom_call.1} parent=1 // pred_check_branch
      %61 = sbr.rel (%p59) target = $region33
    $region32: #{tpu_custom_call.1} parent=1 // pred_region
      %v62 = vld [vmem:[#allocation3] sm:$0xff]
      %v63 = vpack.c.bf16 %v62, %v62
      %v64 = vld [vmem:[#allocation6] sm:$0xf]
      %v65 = vld [vmem:[#allocation6 + $0x4] sm:$0xf]
      %v66 = vld [vmem:[#allocation6 + $0x8] sm:$0xf]
      %v67 = vld [vmem:[#allocation6 + $0xc] sm:$0xf]
      %v68 = vld [vmem:[%s2] sm:$0x1]
      %v70 = vlaneseq
      %v71 = vshrl.u32 %v70, 7
      %v72 = vsub.s32 0, %v71
      %v73 = vrot.slane %v68, %v72
      %v79 = vunpack.c.l.b16 %v64
      %v80 = vunpack.c.l.b16 %v65
      %v81 = vunpack.c.l.b16 %v66
      %v82 = vunpack.c.l.b16 %v67
      %v83 = vpack.c.b16 %v80, %v79
      %v84 = vpack.c.b16 %v82, %v81
      %vm87 = vcmask 261120
      %v89 = vsel %vm87, %v63, 0
      %91 = vmatprep.subr.bf16.mxu0 0
      %92 = vmatpush1.bf16.msra.mxu0 0
      %93 = vmatprep.subr.bf16.mxu0 0
      %94 = vmatpush1.bf16.msra.mxu0 0
      %95 = vmatprep.subr.bf16.mxu0 0
      %96 = vmatpush1.bf16.msra.mxu0 0
      %97 = vmatprep.subr.bf16.mxu0 0
      %98 = vmatpush1.bf16.msra.mxu0 0
      %99 = vmatprep.subr.bf16.mxu0 0
      %100 = vmatpush1.bf16.msra.mxu0 0
      %101 = vmatprep.subr.bf16.mxu0 0
      %102 = vmatpush1.bf16.msra.mxu0 0
      %103 = vmatprep.subr.bf16.mxu0 0
      %104 = vmatpush1.bf16.msra.mxu0 %v84
      %105 = vmatprep.subr.bf16.mxu0 0
      %106 = vmatpush1.bf16.msra.mxu0 %v83
      %107 = vmatprep.subr.bf16.mxu0 0
      %108 = vmatpush2.bf16.msra.mxu0 0
      %109 = vmatprep.subr.bf16.mxu0 0
      %110 = vmatpush2.bf16.msra.mxu0 0
      %111 = vmatprep.subr.bf16.mxu0 0
      %112 = vmatpush2.bf16.msra.mxu0 0
      %113 = vmatprep.subr.bf16.mxu0 0
      %114 = vmatpush2.bf16.msra.mxu0 0
      %115 = vmatprep.subr.bf16.mxu0 0
      %116 = vmatpush2.bf16.msra.mxu0 0
      %117 = vmatprep.subr.bf16.mxu0 0
      %118 = vmatpush2.bf16.msra.mxu0 0
      %119 = vmatprep.subr.bf16.mxu0 0
      %120 = vmatpush2.bf16.msra.mxu0 0
      %121 = vmatprep.subr.bf16.mxu0 0
      %122 = vmatpush2.bf16.msra.mxu0 0
      %123 = vmatprep.mubr.bf16.mxu0 0
      %124 = vmatmul.mubr.bf16.gmra.mxu0 %v89
      %v125 = vpop.f32.mrf.mxu0
      %v126 = vadd.f32 %v73, %v125
      %v127 = vpop.f32.mrf.mxu0
      %v128 = vpop.f32.mrf.mxu0
      %v129 = vpop.f32.mrf.mxu0
      %130 = vdwg.mxu0
      %v131 = vmul.f32 %v126, %v126
      %132 = vadd.xlane.f32.xlu0 %v131
      %v133 = vpop.xlane.xlu0 %132
      %v134 = vmax.f32 %v133, 1e-24
      %v135 = vrsqrt.pop %v134
      %v136 = vmul.f32 %v135, 50.0
      %v137 = vmul.f32 %v126, %v136
      %v138 = vpack.c.bf16 %v137, %v137
      %139 = vst [vmem:[#allocation2] sm:$0xf] %v138
    $region33: #{tpu_custom_call.1} parent=1 // pred_fallthru
      _
    %v140 = vld [vmem:[#allocation2] sm:$0xf]
    %v141 = vld [vmem:[#allocation8] sm:$0xf]
    %v142 = vld [vmem:[#allocation8 + $0x4] sm:$0xf]
    %v143 = vld [vmem:[#allocation8 + $0x8] sm:$0xf]
    %v144 = vld [vmem:[#allocation8 + $0xc] sm:$0xf]
    %v145 = vld [vmem:[#allocation8 + $0x10] sm:$0xf]
    %v146 = vld [vmem:[#allocation8 + $0x14] sm:$0xf]
    %v147 = vld [vmem:[#allocation8 + $0x18] sm:$0xf]
    %v148 = vld [vmem:[#allocation8 + $0x1c] sm:$0xf]
    %v149 = vld [vmem:[#allocation8 + $0x20] sm:$0xf]
    %v150 = vld [vmem:[#allocation8 + $0x24] sm:$0xf]
    %v151 = vld [vmem:[#allocation8 + $0x28] sm:$0xf]
    %v152 = vld [vmem:[#allocation8 + $0x2c] sm:$0xf]
    %v153 = vld [vmem:[#allocation8 + $0x30] sm:$0xf]
    %v154 = vld [vmem:[#allocation8 + $0x34] sm:$0xf]
    %v155 = vld [vmem:[#allocation8 + $0x38] sm:$0xf]
    %v156 = vld [vmem:[#allocation8 + $0x3c] sm:$0xf]
    %v173 = vunpack.c.l.b16 %v141
    %v174 = vunpack.c.l.b16 %v142
    %v175 = vunpack.c.l.b16 %v143
    %v176 = vunpack.c.l.b16 %v144
    %v177 = vunpack.c.l.b16 %v145
    %v178 = vunpack.c.l.b16 %v146
    %v179 = vunpack.c.l.b16 %v147
    %v180 = vunpack.c.l.b16 %v148
    %v181 = vunpack.c.l.b16 %v149
    %v182 = vunpack.c.l.b16 %v150
    %v183 = vunpack.c.l.b16 %v151
    %v184 = vunpack.c.l.b16 %v152
    %v185 = vunpack.c.l.b16 %v153
    %v186 = vunpack.c.l.b16 %v154
    %v187 = vunpack.c.l.b16 %v155
    %v188 = vunpack.c.l.b16 %v156
    %v189 = vpack.c.b16 %v174, %v173
    %v190 = vpack.c.b16 %v176, %v175
    %v191 = vpack.c.b16 %v178, %v177
    %v192 = vpack.c.b16 %v180, %v179
    %v193 = vpack.c.b16 %v182, %v181
    %v194 = vpack.c.b16 %v184, %v183
    %v195 = vpack.c.b16 %v186, %v185
    %v196 = vpack.c.b16 %v188, %v187
    %205 = vmatprep.subr.bf16.mxu0 0
    %206 = vmatpush1.bf16.msra.mxu0 %v196
    %207 = vmatprep.subr.bf16.mxu0 0
    %208 = vmatpush1.bf16.msra.mxu0 %v195
    %209 = vmatprep.subr.bf16.mxu0 0
    %210 = vmatpush1.bf16.msra.mxu0 %v194
    %211 = vmatprep.subr.bf16.mxu0 0
    %212 = vmatpush1.bf16.msra.mxu0 %v193
    %213 = vmatprep.subr.bf16.mxu0 0
    %214 = vmatpush1.bf16.msra.mxu0 %v192
    %215 = vmatprep.subr.bf16.mxu0 0
    %216 = vmatpush1.bf16.msra.mxu0 %v191
    %217 = vmatprep.subr.bf16.mxu0 0
    %218 = vmatpush1.bf16.msra.mxu0 %v190
    %219 = vmatprep.subr.bf16.mxu0 0
    %220 = vmatpush1.bf16.msra.mxu0 %v189
    %221 = vmatprep.subr.bf16.mxu0 0
    %222 = vmatpush2.bf16.msra.mxu0 0
    %223 = vmatprep.subr.bf16.mxu0 0
    %224 = vmatpush2.bf16.msra.mxu0 0
    %225 = vmatprep.subr.bf16.mxu0 0
    %226 = vmatpush2.bf16.msra.mxu0 0
    %227 = vmatprep.subr.bf16.mxu0 0
    %228 = vmatpush2.bf16.msra.mxu0 0
    %229 = vmatprep.subr.bf16.mxu0 0
    %230 = vmatpush2.bf16.msra.mxu0 0
    %231 = vmatprep.subr.bf16.mxu0 0
    %232 = vmatpush2.bf16.msra.mxu0 0
    %233 = vmatprep.subr.bf16.mxu0 0
    %234 = vmatpush2.bf16.msra.mxu0 0
    %235 = vmatprep.subr.bf16.mxu0 0
    %236 = vmatpush2.bf16.msra.mxu0 0
    %237 = vmatprep.mubr.bf16.mxu0 0
    %238 = vmatmul.mubr.bf16.gmra.mxu0 %v140
    %v239 = vpop.f32.mrf.mxu0
    %v240 = vadd.f32 0.0, %v239
    %v241 = vpop.f32.mrf.mxu0
    %v242 = vpop.f32.mrf.mxu0
    %v243 = vpop.f32.mrf.mxu0
    %244 = vdwg.mxu0
    %245 = vst [vmem:[#allocation9] sm:$0xff] %v240
    // Predicated region
    $region34: #{tpu_custom_call.1} parent=1 // pred_check
      _
    $region35: #{tpu_custom_call.1} parent=1 // pred_check_branch
      %247 = sbr.rel (0) target = $region37
    $region36: #{tpu_custom_call.1} parent=1 // pred_region
      %s249 = ssub.s32 128, 128
      %250 = vsyncadd [#allocation5], %s249
      %s252 = sshll.u32 [#allocation9], 4
      %s253 = int_to_ptr.vmem [resolvable:$true] %s252
      %255 = dma.vmem_to_hbm [thread:$0]  %s253, 128, %s4, [#allocation5]
    $region37: #{tpu_custom_call.1} parent=1 // pred_fallthru
      _
    // Predicated region
    $region38: #{tpu_custom_call.1} parent=1 // pred_check
      _
    $region39: #{tpu_custom_call.1} parent=1 // pred_check_branch
      %257 = sbr.rel (0) target = $region41
    $region40: #{tpu_custom_call.1} parent=1 // pred_region
      %258 = dma.done [#allocation5], 128
    $region41: #{tpu_custom_call.1} parent=1 // pred_fallthru
      _
    %259 = vsyncpa [#allocation4], 1
    %260 = vsyncpa [#allocation7], 1
    %261 = vsyncpa [#allocation5], 1

</llo_original>
